<compile_context>
chip_gen: v6e
topology: v6e:2x2x1
jax: 0.10.0
libtpu: 0.0.40
codegen_flags: <defaults>
</compile_context>

<pallas_src>
import functools
import math

import jax
import jax.numpy as jnp
from jax.experimental import pallas as pl
from jax.experimental.pallas import tpu as pltpu


# ----------------------------------------------------------------------------
# VMEM budgeting
# ----------------------------------------------------------------------------

def _default_vmem_limit():
    """Scoped-VMEM request: generous on v5e/v6e (128 MiB), safe on v7x (64 MiB)."""
    try:
        cap = int(pltpu.get_tpu_info().vmem_capacity_bytes)
        return int(min(max(cap - (16 << 20), 32 << 20), 112 << 20))
    except Exception:
        return 48 << 20


_VMEM_LIMIT = _default_vmem_limit()


def _row_blocking(rows, per_row_fp32_elems, max_tile=1024):
    """Pick a row tile (multiple of 8, >=256 when possible, sized for VMEM).

    Prefers a tile that exactly divides `rows` so no host-side padding pass
    is needed.  Returns (tile, padded_rows).
    """
    budget = max(8 << 20, _VMEM_LIMIT // 3)
    per_row_bytes = max(per_row_fp32_elems, 1) * 4
    cap = budget // (2 * per_row_bytes)          # 2x for double-buffering
    cap = int(min(max_tile, max(256, cap)))
    cap -= cap % 8
    if rows <= cap:
        tile = ((rows + 7) // 8) * 8
        return tile, tile
    if rows % 8 == 0:
        t = cap
        while t >= 128:                          # largest mult-of-8 divisor
            if rows % t == 0:
                return t, rows
            t -= 8
    tile = cap - cap % 128 if cap >= 128 else max(8, cap)
    rows_p = ((rows + tile - 1) // tile) * tile
    return tile, rows_p


def _pad_rows(x2, rows_p):
    rows = x2.shape[0]
    if rows == rows_p:
        return x2
    return jnp.pad(x2, ((0, rows_p - rows), (0, 0)))


# ----------------------------------------------------------------------------
# In-kernel helpers
# ----------------------------------------------------------------------------

def _layernorm_rows(x_f32, alpha, beta, eps):
    """LayerNorm over last dim of a (rows, H) fp32 tile.

    Two-pass (mean first, then mean-subtracted sum of squares) to avoid the
    catastrophic cancellation of the single-pass formula.  Matches the PyTorch
    module: unbiased std (N-1), eps added to std, scalar alpha/beta.
    """
    n = x_f32.shape[-1]
    mean = jnp.mean(x_f32, axis=-1, keepdims=True)
    xc = x_f32 - mean
    var = jnp.sum(xc * xc, axis=-1, keepdims=True) * jnp.float32(1.0 / (n - 1))
    std = jnp.sqrt(var)
    inv = alpha / (std + jnp.float32(eps))       # (rows, 1)
    return xc * inv + beta


# ----------------------------------------------------------------------------
# Kernels
# ----------------------------------------------------------------------------

def _ln_qkv_kernel(alpha_ref, beta_ref, x_ref, w_ref, b_ref, qkv_ref, *, eps):
    """LayerNorm + packed Q|K|V projection.  1/sqrt(dk) pre-folded into w/b."""
    x = x_ref[...].astype(jnp.float32)
    xn = _layernorm_rows(x, alpha_ref[0], beta_ref[0], eps)
    y = jnp.dot(xn.astype(w_ref.dtype), w_ref[...],
                preferred_element_type=jnp.float32)
    y = y + b_ref[...].astype(jnp.float32)
    qkv_ref[...] = y.astype(qkv_ref.dtype)


def _attention_kernel(qkv_ref, mask_ref, o_ref, *, heads, d_model):
    """Per-batch attention.  Heads sliced in-kernel; one lane-dense store."""
    dk = d_model // heads
    mask = mask_ref[...]                         # (Sm, S), Sm in {1, S}
    neg = jnp.float32(-1e9)
    head_outs = []
    for h in range(heads):                       # static unroll over heads
        q = qkv_ref[:, pl.ds(h * dk, dk)]                       # pre-scaled q
        k = qkv_ref[:, pl.ds(d_model + h * dk, dk)]
        v = qkv_ref[:, pl.ds(2 * d_model + h * dk, dk)]
        s = jax.lax.dot_general(q, k, (((1,), (1,)), ((), ())),
                                preferred_element_type=jnp.float32)  # (S, S)
        s = jnp.where(mask == 0, neg, s)
        mx = jnp.max(s, axis=-1, keepdims=True)
        p = jnp.exp(s - mx)
        w = p * pl.reciprocal(jnp.sum(p, axis=-1, keepdims=True), approx=True)
        head_outs.append(jnp.dot(w.astype(v.dtype), v,
                                 preferred_element_type=jnp.float32))
    o_ref[...] = jnp.concatenate(head_outs, axis=-1).astype(o_ref.dtype)


def _wo_ln_ffn_kernel(alpha_ref, beta_ref, a_ref, wo_ref, bo_ref,
                      w1_ref, b1_ref, w2_ref, b2_ref, o_ref, *, eps):
    """Fused: y1 = attn @ wo + bo; LN(y1); Linear->ReLU->Linear."""
    a = a_ref[...]
    y1 = jnp.dot(a, wo_ref[...], preferred_element_type=jnp.float32)
    y1 = y1 + bo_ref[...].astype(jnp.float32)
    xn = _layernorm_rows(y1, alpha_ref[0], beta_ref[0], eps)
    h = jnp.dot(xn.astype(w1_ref.dtype), w1_ref[...],
                preferred_element_type=jnp.float32)
    h = jnp.maximum(h + b1_ref[...].astype(jnp.float32), jnp.float32(0.0))
    y2 = jnp.dot(h.astype(w2_ref.dtype), w2_ref[...],
                 preferred_element_type=jnp.float32)
    y2 = y2 + b2_ref[...].astype(jnp.float32)
    o_ref[...] = y2.astype(o_ref.dtype)


# ----------------------------------------------------------------------------
# Wrappers
# ----------------------------------------------------------------------------

def ln_qkv_project(x2, alpha, beta, wqkv, bqkv, eps):
    rows, d_model = x2.shape
    n_out = wqkv.shape[1]                        # 3 * d_model
    tile, rows_p = _row_blocking(rows, d_model + n_out)
    xp = _pad_rows(x2, rows_p)
    out = pl.pallas_call(
        functools.partial(_ln_qkv_kernel, eps=eps),
        out_shape=jax.ShapeDtypeStruct((rows_p, n_out), x2.dtype),
        grid=(rows_p // tile,),
        in_specs=[
            pl.BlockSpec(memory_space=pltpu.MemorySpace.SMEM),   # alpha
            pl.BlockSpec(memory_space=pltpu.MemorySpace.SMEM),   # beta
            pl.BlockSpec((tile, d_model), lambda i: (i, 0)),     # x tile
            pl.BlockSpec((d_model, n_out), lambda i: (0, 0)),    # wqkv
            pl.BlockSpec((1, n_out), lambda i: (0, 0)),          # bqkv
        ],
        out_specs=pl.BlockSpec((tile, n_out), lambda i: (i, 0)),
        compiler_params=pltpu.CompilerParams(
            dimension_semantics=("parallel",),
            vmem_limit_bytes=_VMEM_LIMIT),
    )(alpha, beta, xp, wqkv, bqkv)
    return out[:rows]


def attention_fused_heads(qkv3, mask, heads):
    B, S, three_d = qkv3.shape
    d_model = three_d // 3
    Sm = mask.shape[2]                           # 1 (padding mask) or S
    return pl.pallas_call(
        functools.partial(_attention_kernel, heads=heads, d_model=d_model),
        out_shape=jax.ShapeDtypeStruct((B, S, d_model), qkv3.dtype),
        grid=(B,),
        in_specs=[
            pl.BlockSpec((None, S, three_d), lambda b: (b, 0, 0)),
            pl.BlockSpec((None, None, Sm, S), lambda b: (b, 0, 0, 0)),
        ],
        out_specs=pl.BlockSpec((None, S, d_model), lambda b: (b, 0, 0)),
        compiler_params=pltpu.CompilerParams(
            dimension_semantics=("parallel",),
            vmem_limit_bytes=_VMEM_LIMIT),
    )(qkv3, mask)


def wo_ln_ffn(a2, alpha, beta, wo, bo, w1, b1, w2, b2, eps):
    rows, d_model = a2.shape
    d_ff = w1.shape[1]
    tile, rows_p = _row_blocking(rows, 3 * d_model + d_ff)
    ap = _pad_rows(a2, rows_p)
    out = pl.pallas_call(
        functools.partial(_wo_ln_ffn_kernel, eps=eps),
        out_shape=jax.ShapeDtypeStruct((rows_p, d_model), a2.dtype),
        grid=(rows_p // tile,),
        in_specs=[
            pl.BlockSpec(memory_space=pltpu.MemorySpace.SMEM),   # alpha
            pl.BlockSpec(memory_space=pltpu.MemorySpace.SMEM),   # beta
            pl.BlockSpec((tile, d_model), lambda i: (i, 0)),     # attn tile
            pl.BlockSpec((d_model, d_model), lambda i: (0, 0)),  # wo
            pl.BlockSpec((1, d_model), lambda i: (0, 0)),        # bo
            pl.BlockSpec((d_model, d_ff), lambda i: (0, 0)),     # w1
            pl.BlockSpec((1, d_ff), lambda i: (0, 0)),           # b1
            pl.BlockSpec((d_ff, d_model), lambda i: (0, 0)),     # w2
            pl.BlockSpec((1, d_model), lambda i: (0, 0)),        # b2
        ],
        out_specs=pl.BlockSpec((tile, d_model), lambda i: (i, 0)),
        compiler_params=pltpu.CompilerParams(
            dimension_semantics=("parallel",),
            vmem_limit_bytes=_VMEM_LIMIT),
    )(alpha, beta, ap, wo, bo, w1, b1, w2, b2)
    return out[:rows]


def encoder_block_forward(x, source_mask, params, eps=1e-5):
    """EncoderBlock.forward (eval mode: dropout = identity).

    Note: the reference ResidualConnection does NOT add the residual, so this
    computes   y1 = w_o(attn(LN(x))) ;  y2 = FFN(LN(y1)).
    `source_mask` is a (B, 1, 1, S) or (B, 1, S, S) mask (1 = attend).
    """
    B, S, D = x.shape
    heads = params["heads"]
    dk = D // heads
    scale = 1.0 / math.sqrt(dk)

    # Host-side weight prep (O(D^2), trivial): fold 1/sqrt(dk) into wq/bq and
    # pack Q|K|V into one lane-dense (D, 3D) weight.
    wqkv = jnp.concatenate(
        [params["wq"] * scale, params["wk"], params["wv"]], axis=1)
    bqkv = jnp.concatenate(
        [params["bq"] * scale, params["bk"], params["bv"]], axis=1)

    x2 = x.reshape(B * S, D)

    # --- sublayer 1: self-attention on LN(x) --------------------------------
    qkv2 = ln_qkv_project(x2, params["ln1_alpha"], params["ln1_beta"],
                          wqkv, bqkv, eps)
    attn = attention_fused_heads(qkv2.reshape(B, S, 3 * D), source_mask, heads)

    # --- fused w_o + sublayer 2: feed-forward on LN(y1) ----------------------
    y2 = wo_ln_ffn(attn.reshape(B * S, D),
                   params["ln2_alpha"], params["ln2_beta"],
                   params["wo"], params["bo"],
                   params["w1"], params["b1"],
                   params["w2"], params["b2"], eps)
    return y2.reshape(B, S, D)


# ----------------------------------------------------------------------------
# Pure-JAX reference (mirrors the PyTorch module, eval mode)
# ----------------------------------------------------------------------------

def _ln_ref(x, alpha, beta, eps):
    mean = jnp.mean(x, axis=-1, keepdims=True)
    std = jnp.std(x, axis=-1, keepdims=True, ddof=1)
    return alpha * (x - mean) / (std + eps) + beta


def encoder_block_ref(x, mask, p, eps=1e-5):
    B, S, D = x.shape
    heads = p["heads"]
    dk = D // heads
    xn = _ln_ref(x, p["ln1_alpha"][0], p["ln1_beta"][0], eps)
    q = xn @ p["wq"] + p["bq"][0]
    k = xn @ p["wk"] + p["bk"][0]
    v = xn @ p["wv"] + p["bv"][0]

    def split(t):
        return t.reshape(B, S, heads, dk).transpose(0, 2, 1, 3)

    q, k, v = split(q), split(k), split(v)
    scores = q @ jnp.swapaxes(k, -1, -2) / math.sqrt(dk)
    scores = jnp.where(mask == 0, -1e9, scores)
    w = jax.nn.softmax(scores, axis=-1)
    a = (w @ v).transpose(0, 2, 1, 3).reshape(B, S, D)
    y1 = a @ p["wo"] + p["bo"][0]
    yn = _ln_ref(y1, p["ln2_alpha"][0], p["ln2_beta"][0], eps)
    h = jnp.maximum(yn @ p["w1"] + p["b1"][0], 0.0)
    return h @ p["w2"] + p["b2"][0]


# ----------------------------------------------------------------------------
# Demo / correctness check
# ----------------------------------------------------------------------------

if __name__ == "__main__":
    key = jax.random.PRNGKey(0)
    B, S, D, H, DFF = 2, 8, 32, 4, 64

    ks = jax.random.split(key, 13)

    def wgen(k, shape, scale=0.1):
        return (scale * jax.random.normal(k, shape)).astype(jnp.float32)

    # Weights are stored in "x @ W + b" layout (equivalent to PyTorch's W.T).
    params = {
        "heads": H,
        "ln1_alpha": jnp.ones((1,), jnp.float32),
        "ln1_beta": jnp.zeros((1,), jnp.float32),
        "ln2_alpha": jnp.ones((1,), jnp.float32),
        "ln2_beta": jnp.zeros((1,), jnp.float32),
        "wq": wgen(ks[0], (D, D)), "bq": wgen(ks[1], (1, D)),
        "wk": wgen(ks[2], (D, D)), "bk": wgen(ks[3], (1, D)),
        "wv": wgen(ks[4], (D, D)), "bv": wgen(ks[5], (1, D)),
        "wo": wgen(ks[6], (D, D)), "bo": wgen(ks[7], (1, D)),
        "w1": wgen(ks[8], (D, DFF)), "b1": wgen(ks[9], (1, DFF)),
        "w2": wgen(ks[10], (DFF, D)), "b2": wgen(ks[11], (1, D)),
    }

    x = jax.random.normal(ks[12], (B, S, D), dtype=jnp.float32)
    # Padding-style source mask (1 = attend, 0 = masked); mask last 2 keys of
    # the second batch element to exercise the masked_fill path.
    mask = jnp.ones((B, 1, 1, S), jnp.int32)
    mask = mask.at[1, 0, 0, S - 2:].set(0)

    out = encoder_block_forward(x, mask, params, eps=1e-5)
    out = jax.block_until_ready(out)

    ref = encoder_block_ref(x, mask, params, eps=1e-5)

    assert out.shape == x.shape and out.dtype == x.dtype
    max_err = float(jnp.max(jnp.abs(out - ref)))
    assert jnp.allclose(out, ref, atol=2e-3, rtol=2e-3), f"max_err={max_err}"
    print("KERNEL_OK")
</pallas_src>

<mosaic_0001>
module attributes {stable_mosaic.version = 11 : i64} {
  func.func @_ln_qkv_kernel(%arg0: i32, %arg1: memref<1xf32, #tpu.memory_space<smem>>, %arg2: memref<1xf32, #tpu.memory_space<smem>>, %arg3: memref<16x32xf32, #tpu.memory_space<vmem>>, %arg4: memref<32x96xf32, #tpu.memory_space<vmem>>, %arg5: memref<1x96xf32, #tpu.memory_space<vmem>>, %arg6: memref<16x96xf32, #tpu.memory_space<vmem>>) attributes {dimension_semantics = [#tpu.dimension_semantics<parallel>], iteration_bounds = array<i64: 1>, scalar_prefetch = 0 : i64, scratch_operands = 0 : i64, tpu.core_type = #tpu.core_type<tc>, window_params = [{transform_indices = @transform_0, window_bounds = array<i64: 1>}, {transform_indices = @transform_1, window_bounds = array<i64: 1>}, {transform_indices = @transform_2, window_bounds = array<i64: 16, 32>}, {pipeline_mode = #tpu.pipeline_mode<synchronous>, transform_indices = @transform_3, window_bounds = array<i64: 32, 96>}, {pipeline_mode = #tpu.pipeline_mode<synchronous>, transform_indices = @transform_4, window_bounds = array<i64: 1, 96>}, {transform_indices = @transform_5, window_bounds = array<i64: 16, 96>}]} {
    %c0 = arith.constant 0 : index
    %c0_0 = arith.constant 0 : index
    %0 = vector.load %arg3[%c0, %c0_0] : memref<16x32xf32, #tpu.memory_space<vmem>>, vector<16x32xf32>
    %c0_1 = arith.constant 0 : index
    %1 = memref.load %arg1[%c0_1] : memref<1xf32, #tpu.memory_space<smem>>
    %c0_2 = arith.constant 0 : index
    %2 = memref.load %arg2[%c0_2] : memref<1xf32, #tpu.memory_space<smem>>
    %cst = arith.constant dense<0.000000e+00> : vector<16xf32>
    %3 = vector.multi_reduction <add>, %0, %cst [1] : vector<16x32xf32> to vector<16xf32>
    %4 = vector.shape_cast %3 : vector<16xf32> to vector<16x1xf32>
    %cst_3 = arith.constant 3.200000e+01 : f32
    %5 = vector.broadcast %cst_3 : f32 to vector<16x1xf32>
    %6 = arith.divf %4, %5 : vector<16x1xf32>
    %7 = vector.broadcast %6 : vector<16x1xf32> to vector<16x32xf32>
    %8 = arith.subf %0, %7 : vector<16x32xf32>
    %9 = arith.mulf %8, %8 : vector<16x32xf32>
    %cst_4 = arith.constant dense<0.000000e+00> : vector<16xf32>
    %10 = vector.multi_reduction <add>, %9, %cst_4 [1] : vector<16x32xf32> to vector<16xf32>
    %11 = vector.shape_cast %10 : vector<16xf32> to vector<16x1xf32>
    %cst_5 = arith.constant 0.0322580636 : f32
    %12 = vector.broadcast %cst_5 : f32 to vector<16x1xf32>
    %13 = arith.mulf %11, %12 : vector<16x1xf32>
    %14 = math.sqrt %13 : vector<16x1xf32>
    %cst_6 = arith.constant 9.99999974E-6 : f32
    %15 = vector.broadcast %cst_6 : f32 to vector<16x1xf32>
    %16 = arith.addf %14, %15 : vector<16x1xf32>
    %17 = vector.broadcast %1 : f32 to vector<16x1xf32>
    %18 = arith.divf %17, %16 : vector<16x1xf32>
    %19 = vector.broadcast %18 : vector<16x1xf32> to vector<16x32xf32>
    %20 = arith.mulf %8, %19 : vector<16x32xf32>
    %21 = vector.broadcast %2 : f32 to vector<16x32xf32>
    %22 = arith.addf %20, %21 : vector<16x32xf32>
    %c0_7 = arith.constant 0 : index
    %c0_8 = arith.constant 0 : index
    %23 = vector.load %arg4[%c0_7, %c0_8] : memref<32x96xf32, #tpu.memory_space<vmem>>, vector<32x96xf32>
    %cst_9 = arith.constant dense<0.000000e+00> : vector<16x96xf32>
    %24 = tpu.matmul %22, %23, %cst_9 {dimension_numbers = #tpu.dot_dimension_numbers<[1], [0], [0], [1], [0, 0, 1, 1], [], []>} : vector<16x32xf32>, vector<32x96xf32>, vector<16x96xf32> -> vector<16x96xf32>
    %c0_10 = arith.constant 0 : index
    %c0_11 = arith.constant 0 : index
    %25 = vector.load %arg5[%c0_10, %c0_11] : memref<1x96xf32, #tpu.memory_space<vmem>>, vector<1x96xf32>
    %26 = vector.broadcast %25 : vector<1x96xf32> to vector<16x96xf32>
    %27 = arith.addf %24, %26 : vector<16x96xf32>
    %c0_12 = arith.constant 0 : index
    %c0_13 = arith.constant 0 : index
    %28 = vector.load %arg6[%c0_12, %c0_13] : memref<16x96xf32, #tpu.memory_space<vmem>>, vector<16x96xf32>
    tpu.vector_store %arg6[%c0_12, %c0_13], %27 {strides = array<i32>} : memref<16x96xf32, #tpu.memory_space<vmem>>, vector<16x96xf32>,
    return
  }
  func.func @transform_0(%arg0: i32) -> i32 {
    %c0_i32 = arith.constant 0 : i32
    %c0_i32_0 = arith.constant 0 : i32
    return %c0_i32 : i32
  }
  func.func @transform_1(%arg0: i32) -> i32 {
    %c0_i32 = arith.constant 0 : i32
    %c0_i32_0 = arith.constant 0 : i32
    return %c0_i32 : i32
  }
  func.func @transform_2(%arg0: i32) -> (i32, i32) {
    %c0_i32 = arith.constant 0 : i32
    %c0_i32_0 = arith.constant 0 : i32
    return %arg0, %c0_i32 : i32, i32
  }
  func.func @transform_3(%arg0: i32) -> (i32, i32) {
    %c0_i32 = arith.constant 0 : i32
    %c0_i32_0 = arith.constant 0 : i32
    %c0_i32_1 = arith.constant 0 : i32
    return %c0_i32, %c0_i32_0 : i32, i32
  }
  func.func @transform_4(%arg0: i32) -> (i32, i32) {
    %c0_i32 = arith.constant 0 : i32
    %c0_i32_0 = arith.constant 0 : i32
    %c0_i32_1 = arith.constant 0 : i32
    return %c0_i32, %c0_i32_0 : i32, i32
  }
  func.func @transform_5(%arg0: i32) -> (i32, i32) {
    %c0_i32 = arith.constant 0 : i32
    %c0_i32_0 = arith.constant 0 : i32
    return %arg0, %c0_i32 : i32, i32
  }
}

</mosaic_0001>

<llo_original>
// kernel: tpu_custom_call.1
$region0: #{tpu_custom_call.1}
  #allocation0 [shape = 'u32[]', space=smem, size = 0x4, offset = 0x4, fixed_abs, tag = 'smem constant byte address 0x4 - core index']
  #allocation1 [shape = 'u32[144,128]{1,0:T(1,128)}', space=vmem, size = 0x12000, scoped, tag = 'internal scratch']
  #allocation2 [shape = 'f32[1]{0:T(128)S(6)}', space=smem, size = 0x200, scoped, tag = 'scoped memory for tpu_custom_call.1']
  #allocation3 [shape = 'f32[1]{0:T(128)S(6)}', space=smem, size = 0x200, scoped, tag = 'scoped memory for tpu_custom_call.1']
  %s0 = inlined_call_operand.<no memory space> [shape: f32[1], index: 0, kind: input, shape index: {}]
  %s1 = inlined_call_operand.<no memory space> [shape: f32[1], index: 1, kind: input, shape index: {}]
  %s2 = inlined_call_operand.hbm [shape: f32[16,32], index: 2, kind: input, shape index: {}]
  %s3 = inlined_call_operand.hbm [shape: f32[32,96], index: 3, kind: input, shape index: {}]
  %s4 = inlined_call_operand.vmem [shape: f32[1,96], index: 4, kind: input, shape index: {}]
  %s5 = inlined_call_operand.hbm [shape: f32[16,96], index: 5, kind: output, shape index: {}]
  %s6 = sld [smem:[#allocation0]]
  $region38: #{tpu_custom_call.1} parent=0
    _
  %s8 = ssub.s32 1, %s6
  %s9 = scalar_select 0, %s8, %s6
  %10 = sst [smem:[#allocation2]] %s0
  %11 = sst [smem:[#allocation3]] %s1
  $region1: #{tpu_custom_call.1} parent=0
    #allocation4 [shape = 'u8[8192]{0}', space=vmem, size = 0x2000, scoped, tag = 'input window, operand 2, single buffered']
    #allocation5 [shape = 's32[1]{0}', space=sflag, size = 0x4, scoped, tag = 'scoped memory for tpu_custom_call.1']
    #allocation6 [shape = 's32[1]{0}', space=sflag, size = 0x4, scoped, tag = 'scoped memory for tpu_custom_call.1']
    #allocation7 [shape = 'u8[16384]{0}', space=vmem, size = 0x4000, scoped, tag = 'input window, operand 3, single buffered']
    #allocation8 [shape = 's32[1]{0}', space=sflag, size = 0x4, scoped, tag = 'scoped memory for tpu_custom_call.1']
    #allocation9 [shape = 'u8[8192]{0}', space=vmem, size = 0x2000, scoped, tag = 'output window, operand 0, single buffered']
    %12 = vsyncpa [#allocation5], 0
    %13 = vsyncpa [#allocation8], 0
    %14 = vsyncpa [#allocation6], 0
    // Predicated region
    $region2: #{tpu_custom_call.1} parent=1 // pred_check
      _
    $region3: #{tpu_custom_call.1} parent=1 // pred_check_branch
      %16 = sbr.rel (0) target = $region5
    $region4: #{tpu_custom_call.1} parent=1 // pred_region
      _
    $region5: #{tpu_custom_call.1} parent=1 // pred_fallthru
      _
    // Predicated region
    $region6: #{tpu_custom_call.1} parent=1 // pred_check
      _
    $region7: #{tpu_custom_call.1} parent=1 // pred_check_branch
      %18 = sbr.rel (0) target = $region9
    $region8: #{tpu_custom_call.1} parent=1 // pred_region
      _
    $region9: #{tpu_custom_call.1} parent=1 // pred_fallthru
      _
    // Predicated region
    $region10: #{tpu_custom_call.1} parent=1 // pred_check
      _
    $region11: #{tpu_custom_call.1} parent=1 // pred_check_branch
      %20 = sbr.rel (0) target = $region13
    $region12: #{tpu_custom_call.1} parent=1 // pred_region
      %s22 = ssub.s32 256, 256
      %23 = vsyncadd [#allocation5], %s22
      %s24 = sshll.u32 [#allocation4], 4
      %s25 = int_to_ptr.vmem [resolvable:$true] %s24
      %30 = dma.hbm_to_vmem [thread:$0]  %s2, 256, %s25, [#allocation5], 128, 128, 8
    $region13: #{tpu_custom_call.1} parent=1 // pred_fallthru
      _
    // Predicated region
    $region14: #{tpu_custom_call.1} parent=1 // pred_check
      _
    $region15: #{tpu_custom_call.1} parent=1 // pred_check_branch
      %32 = sbr.rel (0) target = $region17
    $region16: #{tpu_custom_call.1} parent=1 // pred_region
      %s34 = ssub.s32 512, 512
      %35 = vsyncadd [#allocation8], %s34
      %s36 = sshll.u32 [#allocation7], 4
      %s37 = int_to_ptr.vmem [resolvable:$true] %s36
      %42 = dma.hbm_to_vmem [thread:$0]  %s3, 512, %s37, [#allocation8], 128, 128, 8
    $region17: #{tpu_custom_call.1} parent=1 // pred_fallthru
      _
    // Predicated region
    $region18: #{tpu_custom_call.1} parent=1 // pred_check
      _
    $region19: #{tpu_custom_call.1} parent=1 // pred_check_branch
      %44 = sbr.rel (0) target = $region21
    $region20: #{tpu_custom_call.1} parent=1 // pred_region
      _
    $region21: #{tpu_custom_call.1} parent=1 // pred_fallthru
      _
    // Predicated region
    $region22: #{tpu_custom_call.1} parent=1 // pred_check
      _
    $region23: #{tpu_custom_call.1} parent=1 // pred_check_branch
      %46 = sbr.rel (0) target = $region25
    $region24: #{tpu_custom_call.1} parent=1 // pred_region
      %47 = dma.done [#allocation5], 256
    $region25: #{tpu_custom_call.1} parent=1 // pred_fallthru
      _
    // Predicated region
    $region26: #{tpu_custom_call.1} parent=1 // pred_check
      _
    $region27: #{tpu_custom_call.1} parent=1 // pred_check_branch
      %49 = sbr.rel (0) target = $region29
    $region28: #{tpu_custom_call.1} parent=1 // pred_region
      %50 = dma.done [#allocation8], 512
    $region29: #{tpu_custom_call.1} parent=1 // pred_fallthru
      _
    %v51 = vld [vmem:[#allocation4] sm:$0xff]
    %v52 = vld [vmem:[#allocation4 + $0x8] sm:$0xff]
    %s53 = sld [smem:[#allocation2]]
    %s54 = sld [smem:[#allocation3]]
    %vm55 = vcmask 261120
    %v56 = vsel %vm55, %v51, 0.0
    %57 = vadd.xlane.f32.xlu0 %v56
    %v58 = vpop.xlane.xlu0 %57
    %v59 = vsel %vm55, %v52, 0.0
    %60 = vadd.xlane.f32.xlu0 %v59
    %v61 = vpop.xlane.xlu0 %60
    %v62 = vrcp.pop 32.0
    %v63 = vmul.f32 %v58, %v62
    %v64 = vmul.f32 %v61, %v62
    %v65 = vsub.f32 %v51, %v63
    %v66 = vsub.f32 %v52, %v64
    %v67 = vmul.f32 %v65, %v65
    %v68 = vmul.f32 %v66, %v66
    %v69 = vsel %vm55, %v67, 0.0
    %70 = vadd.xlane.f32.xlu0 %v69
    %v71 = vpop.xlane.xlu0 %70
    %v72 = vsel %vm55, %v68, 0.0
    %73 = vadd.xlane.f32.xlu0 %v72
    %v74 = vpop.xlane.xlu0 %73
    %v75 = vmul.f32 %v71, 0.032258064
    %v76 = vmul.f32 %v74, 0.032258064
    %v77 = vrsqrt.pop %v75
    %v78 = vmul.f32 %v75, %v77
    %vm79 = vcmp.eq.f32.partialorder %v75, inf
    %v80 = vsel %vm79, %v75, %v78
    %vm81 = vcmp.eq.f32.partialorder %v75, 0.0
    %v82 = vand.u32 %v75, 2147483648
    %v83 = vsel %vm81, %v82, %v80
    %v84 = vrsqrt.pop %v76
    %v85 = vmul.f32 %v76, %v84
    %vm86 = vcmp.eq.f32.partialorder %v76, inf
    %v87 = vsel %vm86, %v76, %v85
    %vm88 = vcmp.eq.f32.partialorder %v76, 0.0
    %v89 = vand.u32 %v76, 2147483648
    %v90 = vsel %vm88, %v89, %v87
    %v91 = vadd.f32 %v83, 1e-05
    %v92 = vadd.f32 %v90, 1e-05
    %v93 = vstv %s53
    %v94 = vrcp.pop %v91
    %v95 = vmul.f32 %v93, %v94
    %v96 = vrcp.pop %v92
    %v97 = vmul.f32 %v93, %v96
    %v98 = vmul.f32 %v65, %v95
    %v99 = vmul.f32 %v66, %v97
    %v100 = vstv %s54
    %v101 = vadd.f32 %v98, %v100
    %v102 = vadd.f32 %v99, %v100
    %v103 = vld [vmem:[#allocation7] sm:$0xff]
    %v104 = vld [vmem:[#allocation7 + $0x8] sm:$0xff]
    %v105 = vld [vmem:[#allocation7 + $0x10] sm:$0xff]
    %v106 = vld [vmem:[#allocation7 + $0x18] sm:$0xff]
    %v107 = vld [vmem:[%s4] sm:$0x1]
    %v109 = vlaneseq
    %v110 = vshrl.u32 %v109, 7
    %v111 = vsub.s32 0, %v110
    %v112 = vrot.slane %v107, %v111
    %v115 = vsel %vm55, %v101, 0
    %v118 = vsel %vm55, %v102, 0
    %120 = vmatprep.subr.mxu0 0.0
    %121 = vmatpush1.msra.mxu0 0.0
    %122 = vmatprep.subr.mxu0 0.0
    %123 = vmatpush1.msra.mxu0 0.0
    %124 = vmatprep.subr.mxu0 0.0
    %125 = vmatpush1.msra.mxu0 0.0
    %126 = vmatprep.subr.mxu0 0.0
    %127 = vmatpush1.msra.mxu0 0.0
    %128 = vmatprep.subr.mxu0 0.0
    %129 = vmatpush1.msra.mxu0 0.0
    %130 = vmatprep.subr.mxu0 0.0
    %131 = vmatpush1.msra.mxu0 0.0
    %132 = vmatprep.subr.mxu0 0.0
    %133 = vmatpush1.msra.mxu0 0.0
    %134 = vmatprep.subr.mxu0 0.0
    %135 = vmatpush1.msra.mxu0 0.0
    %136 = vmatprep.subr.mxu0 0.0
    %137 = vmatpush1.msra.mxu0 0.0
    %138 = vmatprep.subr.mxu0 0.0
    %139 = vmatpush1.msra.mxu0 0.0
    %140 = vmatprep.subr.mxu0 0.0
    %141 = vmatpush1.msra.mxu0 0.0
    %142 = vmatprep.subr.mxu0 0.0
    %143 = vmatpush1.msra.mxu0 0.0
    %144 = vmatprep.subr.mxu0 0.0
    %145 = vmatpush1.msra.mxu0 %v106
    %146 = vmatprep.subr.mxu0 0.0
    %147 = vmatpush1.msra.mxu0 %v105
    %148 = vmatprep.subr.mxu0 0.0
    %149 = vmatpush1.msra.mxu0 %v104
    %150 = vmatprep.subr.mxu0 0.0
    %151 = vmatpush1.msra.mxu0 %v103
    %152 = vmatprep.subr.mxu0 0.0
    %153 = vmatpush2.msra.mxu0 0.0
    %154 = vmatprep.subr.mxu0 0.0
    %155 = vmatpush2.msra.mxu0 0.0
    %156 = vmatprep.subr.mxu0 0.0
    %157 = vmatpush2.msra.mxu0 0.0
    %158 = vmatprep.subr.mxu0 0.0
    %159 = vmatpush2.msra.mxu0 0.0
    %160 = vmatprep.subr.mxu0 0.0
    %161 = vmatpush2.msra.mxu0 0.0
    %162 = vmatprep.subr.mxu0 0.0
    %163 = vmatpush2.msra.mxu0 0.0
    %164 = vmatprep.subr.mxu0 0.0
    %165 = vmatpush2.msra.mxu0 0.0
    %166 = vmatprep.subr.mxu0 0.0
    %167 = vmatpush2.msra.mxu0 0.0
    %168 = vmatprep.subr.mxu0 0.0
    %169 = vmatpush2.msra.mxu0 0.0
    %170 = vmatprep.subr.mxu0 0.0
    %171 = vmatpush2.msra.mxu0 0.0
    %172 = vmatprep.subr.mxu0 0.0
    %173 = vmatpush2.msra.mxu0 0.0
    %174 = vmatprep.subr.mxu0 0.0
    %175 = vmatpush2.msra.mxu0 0.0
    %176 = vmatprep.subr.mxu0 0.0
    %177 = vmatpush2.msra.mxu0 0.0
    %178 = vmatprep.subr.mxu0 0.0
    %179 = vmatpush2.msra.mxu0 0.0
    %180 = vmatprep.subr.mxu0 0.0
    %181 = vmatpush2.msra.mxu0 0.0
    %182 = vmatprep.subr.mxu0 0.0
    %183 = vmatpush2.msra.mxu0 0.0
    %184 = vmatprep.mubr.f32.mxu0 0.0
    %185 = vmatmul.mubr.f32.gmra.mxu0 %v115
    %v186 = vpop.f32.mrf.mxu0
    %v187 = vadd.f32 %v112, %v186
    %v188 = vpop.f32.mrf.mxu0
    %189 = vmatprep.mubr.f32.mxu0 0.0
    %190 = vmatmul.mubr.f32.gmra.mxu0 %v118
    %v191 = vpop.f32.mrf.mxu0
    %v192 = vadd.f32 %v112, %v191
    %v193 = vpop.f32.mrf.mxu0
    %194 = vdwg.mxu0
    %vm195 = vcmask 785408
    %196 = vst.msk [vmem:[#allocation9] sm:$0xff] %vm195, %v187
    %197 = vst.msk [vmem:[#allocation9 + $0x8] sm:$0xff] %vm195, %v192
    // Predicated region
    $region30: #{tpu_custom_call.1} parent=1 // pred_check
      _
    $region31: #{tpu_custom_call.1} parent=1 // pred_check_branch
      %199 = sbr.rel (0) target = $region33
    $region32: #{tpu_custom_call.1} parent=1 // pred_region
      %s201 = ssub.s32 256, 256
      %202 = vsyncadd [#allocation6], %s201
      %s203 = sshll.u32 [#allocation9], 4
      %s204 = int_to_ptr.vmem [resolvable:$true] %s203
      %209 = dma.vmem_to_hbm [thread:$0]  %s204, 256, %s5, [#allocation6], 128, 128, 8
    $region33: #{tpu_custom_call.1} parent=1 // pred_fallthru
      _
    // Predicated region
    $region34: #{tpu_custom_call.1} parent=1 // pred_check
      _
    $region35: #{tpu_custom_call.1} parent=1 // pred_check_branch
      %211 = sbr.rel (0) target = $region37
    $region36: #{tpu_custom_call.1} parent=1 // pred_region
      %212 = dma.done [#allocation6], 256
    $region37: #{tpu_custom_call.1} parent=1 // pred_fallthru
      _
    %213 = vsyncpa [#allocation5], 1
    %214 = vsyncpa [#allocation8], 1
    %215 = vsyncpa [#allocation6], 1

</llo_original>
